<compile_context>
chip_gen: v6e
topology: v6e:2x2x1
jax: 0.10.0
libtpu: 0.0.40
codegen_flags: <defaults>
</compile_context>

<pallas_src>
import functools
import math

import jax
import jax.numpy as jnp
from jax.experimental import pallas as pl
from jax.experimental.pallas import tpu as pltpu


# ---------------------------------------------------------------------------
# Kernel: one batch element per grid step.
# ---------------------------------------------------------------------------
def _neuron_embedding_kernel(be_ref, x_ref, w_ref, b_ref, o_ref, *, activation):
    # be_ref: (1, E)        shared learned bias embedding
    # x_ref:  (N_in, E)     input neuron embeddings for this batch element
    # w_ref:  (N_out, N_in) weights for this batch element
    # b_ref:  (N_out, 1)    biases for this batch element
    # o_ref:  (N_out, E)    output neuron embeddings
    wx = jnp.dot(w_ref[...], x_ref[...], preferred_element_type=jnp.float32)
    lin = wx + b_ref[...] * be_ref[...]          # rank-1 update == the concat trick
    o_ref[...] = activation(lin).astype(o_ref.dtype)


# ---------------------------------------------------------------------------
# Module wrapper (JAX/Pallas port of the PyTorch module).
# ---------------------------------------------------------------------------
class ImitationNeuronEmbeddingLayer:
    def __init__(self, input_embedding_size, activation=jnp.tanh,
                 learn_bias_embed=True, key=None):
        self.input_embedding_size = input_embedding_size
        self.activation = activation
        if learn_bias_embed:
            if key is None:
                key = jax.random.PRNGKey(0)
            # torch.nn.init.xavier_uniform_ on a (1, E) tensor:
            # bound = gain * sqrt(6 / (fan_in + fan_out)), fan_in=E, fan_out=1
            bound = math.sqrt(6.0 / (input_embedding_size + 1))
            self.bias_embed = jax.random.uniform(
                key, (1, input_embedding_size), dtype=jnp.float32,
                minval=-bound, maxval=bound)
        else:
            self.bias_embed = jnp.ones((1, input_embedding_size), dtype=jnp.float32)

    def __call__(self, batched_input_embedding, batched_weights, batched_bias):
        B, n_in, E = batched_input_embedding.shape
        _, n_out, _ = batched_weights.shape
        assert E == self.input_embedding_size
        assert batched_weights.shape == (B, n_out, n_in)
        assert batched_bias.shape == (B, n_out)

        bias_col = batched_bias.reshape(B, n_out, 1)
        out_dtype = batched_input_embedding.dtype

        kernel = functools.partial(_neuron_embedding_kernel,
                                   activation=self.activation)

        return pl.pallas_call(
            kernel,
            out_shape=jax.ShapeDtypeStruct((B, n_out, E), out_dtype),
            grid=(B,),
            in_specs=[
                # shared bias embedding, same block for every grid step
                pl.BlockSpec((1, E), lambda b: (0, 0)),
                # per-batch blocks; leading batch dim squeezed out of the refs
                pl.BlockSpec((None, n_in, E), lambda b: (b, 0, 0)),
                pl.BlockSpec((None, n_out, n_in), lambda b: (b, 0, 0)),
                pl.BlockSpec((None, n_out, 1), lambda b: (b, 0, 0)),
            ],
            out_specs=pl.BlockSpec((None, n_out, E), lambda b: (b, 0, 0)),
            compiler_params=pltpu.CompilerParams(
                dimension_semantics=("parallel",),   # shard batch across TCs on v7x
            ),
        )(self.bias_embed, batched_input_embedding, batched_weights, bias_col)


# ---------------------------------------------------------------------------
# Pure-JAX reference (mirrors the PyTorch forward literally, with concats).
# ---------------------------------------------------------------------------
def reference_forward(bias_embed, x, w, b, activation):
    B = x.shape[0]
    rep = jnp.broadcast_to(bias_embed[None], (B,) + bias_embed.shape)
    x_wb = jnp.concatenate([x, rep], axis=1)                   # (B, N_in+1, E)
    w_wb = jnp.concatenate([w, b[:, :, None]], axis=2)         # (B, N_out, N_in+1)
    lin = jnp.einsum('boi,bie->boe', w_wb, x_wb)
    return activation(lin)


if __name__ == "__main__":
    B, N_IN, N_OUT, E = 2, 8, 16, 128   # E multiple of 128 -> lane-dense output

    key = jax.random.PRNGKey(0)
    k_be, k_x, k_w, k_b = jax.random.split(key, 4)

    layer = ImitationNeuronEmbeddingLayer(
        input_embedding_size=E, activation=jnp.tanh,
        learn_bias_embed=True, key=k_be)

    x = jax.random.normal(k_x, (B, N_IN, E), dtype=jnp.float32)
    w = jax.random.normal(k_w, (B, N_OUT, N_IN), dtype=jnp.float32)
    b = jax.random.normal(k_b, (B, N_OUT), dtype=jnp.float32)

    out = layer(x, w, b)
    out = jax.block_until_ready(out)

    ref = reference_forward(layer.bias_embed, x, w, b, jnp.tanh)
    ref = jax.block_until_ready(ref)

    assert out.shape == (B, N_OUT, E), out.shape
    assert out.dtype == x.dtype
    assert jnp.allclose(out, ref, atol=1e-5, rtol=1e-5), \
        float(jnp.max(jnp.abs(out - ref)))

    print("KERNEL_OK")
</pallas_src>

<mosaic_0001>
module attributes {stable_mosaic.version = 11 : i64} {
  func.func @_neuron_embedding_kernel(%arg0: i32, %arg1: memref<1x128xf32, #tpu.memory_space<vmem>>, %arg2: memref<1x8x128xf32, #tpu.memory_space<vmem>>, %arg3: memref<1x16x8xf32, #tpu.memory_space<vmem>>, %arg4: memref<1x16x1xf32, #tpu.memory_space<vmem>>, %arg5: memref<1x16x128xf32, #tpu.memory_space<vmem>>) attributes {dimension_semantics = [#tpu.dimension_semantics<parallel>], iteration_bounds = array<i64: 2>, scalar_prefetch = 0 : i64, scratch_operands = 0 : i64, tpu.core_type = #tpu.core_type<tc>, window_params = [{pipeline_mode = #tpu.pipeline_mode<synchronous>, transform_indices = @transform_0, window_bounds = array<i64: 1, 128>}, {transform_indices = @transform_1, window_bounds = array<i64: 1, 8, 128>}, {transform_indices = @transform_2, window_bounds = array<i64: 1, 16, 8>}, {transform_indices = @transform_3, window_bounds = array<i64: 1, 16, 1>}, {transform_indices = @transform_4, window_bounds = array<i64: 1, 16, 128>}]} {
    %c0 = arith.constant 0 : index
    %c0_0 = arith.constant 0 : index
    %c0_1 = arith.constant 0 : index
    %0 = vector.load %arg3[%c0, %c0_0, %c0_1] : memref<1x16x8xf32, #tpu.memory_space<vmem>>, vector<1x16x8xf32>
    %1 = vector.shape_cast %0 : vector<1x16x8xf32> to vector<16x8xf32>
    %c0_2 = arith.constant 0 : index
    %c0_3 = arith.constant 0 : index
    %c0_4 = arith.constant 0 : index
    %2 = vector.load %arg2[%c0_2, %c0_3, %c0_4] : memref<1x8x128xf32, #tpu.memory_space<vmem>>, vector<1x8x128xf32>
    %3 = vector.shape_cast %2 : vector<1x8x128xf32> to vector<8x128xf32>
    %cst = arith.constant dense<0.000000e+00> : vector<16x128xf32>
    %4 = tpu.matmul %1, %3, %cst {dimension_numbers = #tpu.dot_dimension_numbers<[1], [0], [0], [1], [0, 0, 1, 1], [], []>} : vector<16x8xf32>, vector<8x128xf32>, vector<16x128xf32> -> vector<16x128xf32>
    %c0_5 = arith.constant 0 : index
    %c0_6 = arith.constant 0 : index
    %c0_7 = arith.constant 0 : index
    %5 = vector.load %arg4[%c0_5, %c0_6, %c0_7] : memref<1x16x1xf32, #tpu.memory_space<vmem>>, vector<1x16x1xf32>
    %6 = vector.shape_cast %5 : vector<1x16x1xf32> to vector<16x1xf32>
    %c0_8 = arith.constant 0 : index
    %c0_9 = arith.constant 0 : index
    %7 = vector.load %arg1[%c0_8, %c0_9] : memref<1x128xf32, #tpu.memory_space<vmem>>, vector<1x128xf32>
    %8 = vector.broadcast %6 : vector<16x1xf32> to vector<16x128xf32>
    %9 = vector.broadcast %7 : vector<1x128xf32> to vector<16x128xf32>
    %10 = arith.mulf %8, %9 : vector<16x128xf32>
    %11 = arith.addf %4, %10 : vector<16x128xf32>
    %12 = math.tanh %11 : vector<16x128xf32>
    %c0_10 = arith.constant 0 : index
    %c0_11 = arith.constant 0 : index
    %c0_12 = arith.constant 0 : index
    %13 = vector.load %arg5[%c0_10, %c0_11, %c0_12] : memref<1x16x128xf32, #tpu.memory_space<vmem>>, vector<1x16x128xf32>
    %14 = vector.shape_cast %13 : vector<1x16x128xf32> to vector<16x128xf32>
    %15 = vector.shape_cast %12 : vector<16x128xf32> to vector<1x16x128xf32>
    tpu.vector_store %arg5[%c0_10, %c0_11, %c0_12], %15 {strides = array<i32>} : memref<1x16x128xf32, #tpu.memory_space<vmem>>, vector<1x16x128xf32>,
    return
  }
  func.func @transform_0(%arg0: i32) -> (i32, i32) {
    %c0_i32 = arith.constant 0 : i32
    %c0_i32_0 = arith.constant 0 : i32
    %c0_i32_1 = arith.constant 0 : i32
    return %c0_i32, %c0_i32_0 : i32, i32
  }
  func.func @transform_1(%arg0: i32) -> (i32, i32, i32) {
    %c0_i32 = arith.constant 0 : i32
    %c0_i32_0 = arith.constant 0 : i32
    %c0_i32_1 = arith.constant 0 : i32
    return %arg0, %c0_i32, %c0_i32_0 : i32, i32, i32
  }
  func.func @transform_2(%arg0: i32) -> (i32, i32, i32) {
    %c0_i32 = arith.constant 0 : i32
    %c0_i32_0 = arith.constant 0 : i32
    %c0_i32_1 = arith.constant 0 : i32
    return %arg0, %c0_i32, %c0_i32_0 : i32, i32, i32
  }
  func.func @transform_3(%arg0: i32) -> (i32, i32, i32) {
    %c0_i32 = arith.constant 0 : i32
    %c0_i32_0 = arith.constant 0 : i32
    %c0_i32_1 = arith.constant 0 : i32
    return %arg0, %c0_i32, %c0_i32_0 : i32, i32, i32
  }
  func.func @transform_4(%arg0: i32) -> (i32, i32, i32) {
    %c0_i32 = arith.constant 0 : i32
    %c0_i32_0 = arith.constant 0 : i32
    %c0_i32_1 = arith.constant 0 : i32
    return %arg0, %c0_i32, %c0_i32_0 : i32, i32, i32
  }
}

</mosaic_0001>

<llo_original>
// kernel: tpu_custom_call.1
$region0: #{tpu_custom_call.1}
  #allocation0 [shape = 'u32[]', space=smem, size = 0x4, offset = 0x4, fixed_abs, tag = 'smem constant byte address 0x4 - core index']
  #allocation1 [shape = 'u32[144,128]{1,0:T(1,128)}', space=vmem, size = 0x12000, scoped, tag = 'internal scratch']
  %s0 = inlined_call_operand.vmem [shape: f32[1,128], index: 0, kind: input, shape index: {}]
  %s1 = inlined_call_operand.vmem [shape: f32[2,8,128], index: 1, kind: input, shape index: {}]
  %s2 = inlined_call_operand.vmem [shape: f32[2,16,8], index: 2, kind: input, shape index: {}]
  %s3 = inlined_call_operand.vmem [shape: f32[2,16,1], index: 3, kind: input, shape index: {}]
  %s4 = inlined_call_operand.hbm [shape: f32[2,16,128], index: 4, kind: output, shape index: {}]
  %s5 = sld [smem:[#allocation0]]
  $region49: #{tpu_custom_call.1} parent=0
    _
  %s7 = ssub.s32 1, %s5
  %s8 = scalar_select 0, %s7, %s5
  $region1: #{tpu_custom_call.1} parent=0
    #allocation2 [shape = 'u8[16384]{0}', space=vmem, size = 0x4000, scoped, tag = 'output window, operand 0']
    #allocation3 [shape = 's32[2]{0}', space=sflag, size = 0x8, scoped, tag = 'scoped memory for tpu_custom_call.1']
    %9 = vsyncpa [#allocation3], 0
    %s10 = scalar_lea.sflag [#allocation3], 1
    %11 = vsyncpa %s10, 0
    loop: start=0, step=1, limit=4
    $region2: #{tpu_custom_call.1} parent=1 // loop_pre_header
      _
    $region3: #{tpu_custom_call.1} parent=1 // loop_header
      %s13 = sphi 0, %s17
      %p14 = scmp.ge.s32.totalorder %s13, 4
      %s21 = sphi 0, %s21
      %s23 = sphi 0, %s21
      %s24 = sphi 0, %s23
      %s38 = sphi 0, %s24
      %s44 = sphi 0, %s46
      %s47 = sphi 0, %s44
      %s48 = sphi 0, %s47
      %s64 = sphi 0, %s48
      %s70 = sphi 0, %s72
      %s73 = sphi 0, %s70
      %s74 = sphi 0, %s73
      %s90 = sphi 0, %s74
      %s96 = sphi 0, %s98
      %s99 = sphi 0, %s96
      %s100 = sphi 0, %s99
      %s116 = sphi 0, %s100
      %s122 = sphi 0, %s124
      %s125 = sphi 0, %s122
      %s126 = sphi 0, %s125
      %s142 = sphi 0, %s126
    $region4: #{tpu_custom_call.1} parent=1 // loop_header_branch
      %16 = sbr.rel (%p14) target = $region8
    $region5: #{tpu_custom_call.1} parent=1 // loop_body
      %s18 = ssub.s32 %s13, 1
      %s19 = ssub.s32 %s13, 2
      %s20 = sadd.s32 %s13, 1
      %s22 = sadd.s32 %s21, 1
      %p25 = scmp.eq.s32.totalorder %s13, 1
      %p26 = scmp.ne.s32.totalorder %s21, %s23
      %p27 = scmp.eq.s32.totalorder %s13, 0
      %p28 = por %p26, %p27
      %p29 = scmp.ne.s32.totalorder %s21, %s23
      %p30 = scmp.eq.s32.totalorder %s18, 1
      %p31 = por %p29, %p30
      %p32 = scmp.ne.s32.totalorder %s23, %s24
      %p33 = scmp.eq.s32.totalorder %s18, 0
      %p34 = por %p32, %p33
      %p35 = scmp.ne.s32.totalorder %s23, %s24
      %p36 = scmp.eq.s32.totalorder %s19, 1
      %p37 = por %p35, %p36
      %p39 = scmp.ne.s32.totalorder %s24, %s38
      %p40 = scmp.eq.s32.totalorder %s19, 0
      %p41 = por %p39, %p40
      %s42 = ssub.s32 %s13, %s20
      %p43 = scmp.eq.s32.totalorder %s42, 0
      %s45 = sadd.s32 %s44, 1
      %s46 = scalar_select %p43, %s44, %s45
      %p49 = pneg %p43
      %p50 = scmp.eq.s32.totalorder %s13, 1
      %p51 = por %p49, %p50
      %p52 = scmp.ne.s32.totalorder %s44, %s47
      %p53 = scmp.eq.s32.totalorder %s13, 0
      %p54 = por %p52, %p53
      %p55 = scmp.ne.s32.totalorder %s44, %s47
      %p56 = scmp.eq.s32.totalorder %s18, 1
      %p57 = por %p55, %p56
      %p58 = scmp.ne.s32.totalorder %s47, %s48
      %p59 = scmp.eq.s32.totalorder %s18, 0
      %p60 = por %p58, %p59
      %p61 = scmp.ne.s32.totalorder %s47, %s48
      %p62 = scmp.eq.s32.totalorder %s19, 1
      %p63 = por %p61, %p62
      %p65 = scmp.ne.s32.totalorder %s48, %s64
      %p66 = scmp.eq.s32.totalorder %s19, 0
      %p67 = por %p65, %p66
      %s68 = ssub.s32 %s13, %s20
      %p69 = scmp.eq.s32.totalorder %s68, 0
      %s71 = sadd.s32 %s70, 1
      %s72 = scalar_select %p69, %s70, %s71
      %p75 = pneg %p69
      %p76 = scmp.eq.s32.totalorder %s13, 1
      %p77 = por %p75, %p76
      %p78 = scmp.ne.s32.totalorder %s70, %s73
      %p79 = scmp.eq.s32.totalorder %s13, 0
      %p80 = por %p78, %p79
      %p81 = scmp.ne.s32.totalorder %s70, %s73
      %p82 = scmp.eq.s32.totalorder %s18, 1
      %p83 = por %p81, %p82
      %p84 = scmp.ne.s32.totalorder %s73, %s74
      %p85 = scmp.eq.s32.totalorder %s18, 0
      %p86 = por %p84, %p85
      %p87 = scmp.ne.s32.totalorder %s73, %s74
      %p88 = scmp.eq.s32.totalorder %s19, 1
      %p89 = por %p87, %p88
      %p91 = scmp.ne.s32.totalorder %s74, %s90
      %p92 = scmp.eq.s32.totalorder %s19, 0
      %p93 = por %p91, %p92
      %s94 = ssub.s32 %s13, %s20
      %p95 = scmp.eq.s32.totalorder %s94, 0
      %s97 = sadd.s32 %s96, 1
      %s98 = scalar_select %p95, %s96, %s97
      %p101 = pneg %p95
      %p102 = scmp.eq.s32.totalorder %s13, 1
      %p103 = por %p101, %p102
      %p104 = scmp.ne.s32.totalorder %s96, %s99
      %p105 = scmp.eq.s32.totalorder %s13, 0
      %p106 = por %p104, %p105
      %p107 = scmp.ne.s32.totalorder %s96, %s99
      %p108 = scmp.eq.s32.totalorder %s18, 1
      %p109 = por %p107, %p108
      %p110 = scmp.ne.s32.totalorder %s99, %s100
      %p111 = scmp.eq.s32.totalorder %s18, 0
      %p112 = por %p110, %p111
      %p113 = scmp.ne.s32.totalorder %s99, %s100
      %p114 = scmp.eq.s32.totalorder %s19, 1
      %p115 = por %p113, %p114
      %p117 = scmp.ne.s32.totalorder %s100, %s116
      %p118 = scmp.eq.s32.totalorder %s19, 0
      %p119 = por %p117, %p118
      %s120 = ssub.s32 %s13, %s20
      %p121 = scmp.eq.s32.totalorder %s120, 0
      %s123 = sadd.s32 %s122, 1
      %s124 = scalar_select %p121, %s122, %s123
      %p127 = pneg %p121
      %p128 = scmp.eq.s32.totalorder %s13, 1
      %p129 = por %p127, %p128
      %p130 = scmp.ne.s32.totalorder %s122, %s125
      %p131 = scmp.eq.s32.totalorder %s13, 0
      %p132 = por %p130, %p131
      %p133 = scmp.ne.s32.totalorder %s122, %s125
      %p134 = scmp.eq.s32.totalorder %s18, 1
      %p135 = por %p133, %p134
      %p136 = scmp.ne.s32.totalorder %s125, %s126
      %p137 = scmp.eq.s32.totalorder %s18, 0
      %p138 = por %p136, %p137
      %p139 = scmp.ne.s32.totalorder %s125, %s126
      %p140 = scmp.eq.s32.totalorder %s19, 1
      %p141 = por %p139, %p140
      %p143 = scmp.ne.s32.totalorder %s126, %s142
      %p144 = scmp.eq.s32.totalorder %s19, 0
      %p145 = por %p143, %p144
      %p146 = scmp.le.s32.totalorder 1, %s13
      %p147 = scmp.lt.s32.totalorder %s13, 3
      %p148 = pnand %p146, %p147
      %p149 = pneg %p148
      // Predicated region
      $region9: #{tpu_custom_call.1} parent=5 // pred_check
        _
      $region10: #{tpu_custom_call.1} parent=5 // pred_check_branch
        %151 = sbr.rel (%p148) target = $region12
      $region11: #{tpu_custom_call.1} parent=5 // pred_region
        %s152 = ssub.s32 %s13, 1
        // Predicated region
        $region13: #{tpu_custom_call.1} parent=11 // pred_check
          %p153 = pneg %p34
        $region14: #{tpu_custom_call.1} parent=11 // pred_check_branch
          %155 = sbr.rel (%p153) target = $region16
        $region15: #{tpu_custom_call.1} parent=11 // pred_region
          _
        $region16: #{tpu_custom_call.1} parent=11 // pred_fallthru
          _
      $region12: #{tpu_custom_call.1} parent=5 // pred_fallthru
        _
      %p156 = scmp.lt.s32.totalorder %s13, 2
      // Predicated region
      $region17: #{tpu_custom_call.1} parent=5 // pred_check
        %p157 = pneg %p156
      $region18: #{tpu_custom_call.1} parent=5 // pred_check_branch
        %159 = sbr.rel (%p157) target = $region20
      $region19: #{tpu_custom_call.1} parent=5 // pred_region
        // Predicated region
        $region21: #{tpu_custom_call.1} parent=19 // pred_check
          %p160 = pneg %p54
        $region22: #{tpu_custom_call.1} parent=19 // pred_check_branch
          %162 = sbr.rel (%p160) target = $region24
        $region23: #{tpu_custom_call.1} parent=19 // pred_region
          %p163 = scmp.lt.s32.totalorder %s13, 1
          %s164 = scalar_select %p163, %s13, 1
          %s165 = smul.addr %s164, 8
          %s166 = scalar_lea.vmem %s1, %s165
        $region24: #{tpu_custom_call.1} parent=19 // pred_fallthru
          _
        // Predicated region
        $region25: #{tpu_custom_call.1} parent=19 // pred_check
          %p167 = pneg %p80
        $region26: #{tpu_custom_call.1} parent=19 // pred_check_branch
          %169 = sbr.rel (%p167) target = $region28
        $region27: #{tpu_custom_call.1} parent=19 // pred_region
          %p170 = scmp.lt.s32.totalorder %s13, 1
          %s171 = scalar_select %p170, %s13, 1
          %s172 = smul.addr %s171, 2
          %s173 = smul.addr %s172, 8
          %s174 = scalar_lea.vmem %s2, %s173
        $region28: #{tpu_custom_call.1} parent=19 // pred_fallthru
          _
        // Predicated region
        $region29: #{tpu_custom_call.1} parent=19 // pred_check
          %p175 = pneg %p106
        $region30: #{tpu_custom_call.1} parent=19 // pred_check_branch
          %177 = sbr.rel (%p175) target = $region32
        $region31: #{tpu_custom_call.1} parent=19 // pred_region
          %p178 = scmp.lt.s32.totalorder %s13, 1
          %s179 = scalar_select %p178, %s13, 1
          %s180 = smul.addr %s179, 2
          %s181 = smul.addr %s180, 8
          %s182 = scalar_lea.vmem %s3, %s181
        $region32: #{tpu_custom_call.1} parent=19 // pred_fallthru
          _
      $region20: #{tpu_custom_call.1} parent=5 // pred_fallthru
        _
      %p183 = scmp.le.s32.totalorder 1, %s13
      %p184 = scmp.lt.s32.totalorder %s13, 3
      %p185 = pnand %p183, %p184
      %p186 = pneg %p185
      // Predicated region
      $region33: #{tpu_custom_call.1} parent=5 // pred_check
        _
      $region34: #{tpu_custom_call.1} parent=5 // pred_check_branch
        %188 = sbr.rel (%p185) target = $region36
      $region35: #{tpu_custom_call.1} parent=5 // pred_region
        %s189 = ssub.s32 %s13, 1
        %p190 = pneg %p34
        %p191 = pneg %p31
        %p192 = scmp.lt.s32.totalorder %s18, 1
        %s193 = scalar_select %p192, %s18, 1
        %s194 = smul.addr %s193, 8
        %s195 = scalar_lea.vmem %s1, %s194
        %p196 = pneg %p60
        %p197 = pneg %p57
        %p198 = scmp.lt.s32.totalorder %s18, 1
        %s199 = scalar_select %p198, %s18, 1
        %s200 = smul.addr %s199, 2
        %s201 = smul.addr %s200, 8
        %s202 = scalar_lea.vmem %s2, %s201
        %p203 = pneg %p86
        %p204 = pneg %p83
        %p205 = scmp.lt.s32.totalorder %s18, 1
        %s206 = scalar_select %p205, %s18, 1
        %s207 = smul.addr %s206, 2
        %s208 = smul.addr %s207, 8
        %s209 = scalar_lea.vmem %s3, %s208
        %p210 = pneg %p112
        %p211 = pneg %p109
        %p212 = pneg %p138
        %p213 = pneg %p135
        %s214 = sand.u32 %s125, 1
        %s215 = scalar_lea.sflag [#allocation3], %s214
        %s216 = sand.u32 %s125, 1
        %s217 = smul.addr %s216, 16
        %s218 = scalar_lea.vmem [#allocation2], %s217
        %p219 = scmp.lt.s32.totalorder %s18, 1
        %s220 = scalar_select %p219, %s18, 1
        %s221 = smul.addr %s220, 8
        %s222 = scalar_lea.vmem %s1, %s221
        %p223 = scmp.lt.s32.totalorder %s18, 1
        %s224 = scalar_select %p223, %s18, 1
        %s225 = smul.addr %s224, 2
        %s226 = smul.addr %s225, 8
        %s227 = scalar_lea.vmem %s2, %s226
        %p228 = scmp.lt.s32.totalorder %s18, 1
        %s229 = scalar_select %p228, %s18, 1
        %s230 = smul.addr %s229, 2
        %s231 = smul.addr %s230, 8
        %s232 = scalar_lea.vmem %s3, %s231
        %v233 = vld [vmem:[%s227] sm:$0xff]
        %v234 = vld [vmem:[%s227 + $0x8] sm:$0xff]
        %v235 = vld [vmem:[%s222] sm:$0xff]
        %v236 = vld [vmem:[%s232] sm:$0xff]
        %v237 = vld [vmem:[%s232 + $0x8] sm:$0xff]
        %v238 = vld [vmem:[%s0] sm:$0x1]
        %240 = vset.pattern.permute.xlu0 0
        %241 = vperm.xlu0 %240, %v236
        %v242 = vpop.permute.xlu0 %241
        %245 = vset.pattern.permute.xlu0 0
        %246 = vperm.xlu0 %245, %v237
        %v247 = vpop.permute.xlu0 %246
        %v250 = vlaneseq
        %v251 = vshrl.u32 %v250, 7
        %v252 = vsub.s32 0, %v251
        %v253 = vrot.slane %v238, %v252
        %v255 = vmul.f32 %v242, %v253
        %v256 = vmul.f32 %v247, %v253
        %vm257 = vcmask 64512
        %v259 = vsel %vm257, %v233, 0
        %v262 = vsel %vm257, %v234, 0
        %264 = vmatprep.subr.mxu0 0.0
        %265 = vmatpush1.msra.mxu0 0.0
        %266 = vmatprep.subr.mxu0 0.0
        %267 = vmatpush1.msra.mxu0 0.0
        %268 = vmatprep.subr.mxu0 0.0
        %269 = vmatpush1.msra.mxu0 0.0
        %270 = vmatprep.subr.mxu0 0.0
        %271 = vmatpush1.msra.mxu0 0.0
        %272 = vmatprep.subr.mxu0 0.0
        %273 = vmatpush1.msra.mxu0 0.0
        %274 = vmatprep.subr.mxu0 0.0
        %275 = vmatpush1.msra.mxu0 0.0
        %276 = vmatprep.subr.mxu0 0.0
        %277 = vmatpush1.msra.mxu0 0.0
        %278 = vmatprep.subr.mxu0 0.0
        %279 = vmatpush1.msra.mxu0 0.0
        %280 = vmatprep.subr.mxu0 0.0
        %281 = vmatpush1.msra.mxu0 0.0
        %282 = vmatprep.subr.mxu0 0.0
        %283 = vmatpush1.msra.mxu0 0.0
        %284 = vmatprep.subr.mxu0 0.0
        %285 = vmatpush1.msra.mxu0 0.0
        %286 = vmatprep.subr.mxu0 0.0
        %287 = vmatpush1.msra.mxu0 0.0
        %288 = vmatprep.subr.mxu0 0.0
        %289 = vmatpush1.msra.mxu0 0.0
        %290 = vmatprep.subr.mxu0 0.0
        %291 = vmatpush1.msra.mxu0 0.0
        %292 = vmatprep.subr.mxu0 0.0
        %293 = vmatpush1.msra.mxu0 0.0
        %294 = vmatprep.subr.mxu0 0.0
        %295 = vmatpush1.msra.mxu0 %v235
        %296 = vmatprep.subr.mxu0 0.0
        %297 = vmatpush2.msra.mxu0 0.0
        %298 = vmatprep.subr.mxu0 0.0
        %299 = vmatpush2.msra.mxu0 0.0
        %300 = vmatprep.subr.mxu0 0.0
        %301 = vmatpush2.msra.mxu0 0.0
        %302 = vmatprep.subr.mxu0 0.0
        %303 = vmatpush2.msra.mxu0 0.0
        %304 = vmatprep.subr.mxu0 0.0
        %305 = vmatpush2.msra.mxu0 0.0
        %306 = vmatprep.subr.mxu0 0.0
        %307 = vmatpush2.msra.mxu0 0.0
        %308 = vmatprep.subr.mxu0 0.0
        %309 = vmatpush2.msra.mxu0 0.0
        %310 = vmatprep.subr.mxu0 0.0
        %311 = vmatpush2.msra.mxu0 0.0
        %312 = vmatprep.subr.mxu0 0.0
        %313 = vmatpush2.msra.mxu0 0.0
        %314 = vmatprep.subr.mxu0 0.0
        %315 = vmatpush2.msra.mxu0 0.0
        %316 = vmatprep.subr.mxu0 0.0
        %317 = vmatpush2.msra.mxu0 0.0
        %318 = vmatprep.subr.mxu0 0.0
        %319 = vmatpush2.msra.mxu0 0.0
        %320 = vmatprep.subr.mxu0 0.0
        %321 = vmatpush2.msra.mxu0 0.0
        %322 = vmatprep.subr.mxu0 0.0
        %323 = vmatpush2.msra.mxu0 0.0
        %324 = vmatprep.subr.mxu0 0.0
        %325 = vmatpush2.msra.mxu0 0.0
        %326 = vmatprep.subr.mxu0 0.0
        %327 = vmatpush2.msra.mxu0 0.0
        %328 = vmatprep.mubr.f32.mxu0 0.0
        %329 = vmatmul.mubr.f32.gmra.mxu0 %v259
        %v330 = vpop.f32.mrf.mxu0
        %v331 = vadd.f32 %v255, %v330
        %v332 = vpop.f32.mrf.mxu0
        %333 = vmatprep.mubr.f32.mxu0 0.0
        %334 = vmatmul.mubr.f32.gmra.mxu0 %v262
        %v335 = vpop.f32.mrf.mxu0
        %v336 = vadd.f32 %v256, %v335
        %v337 = vpop.f32.mrf.mxu0
        %338 = vdwg.mxu0
        %v339 = vtanh.pop %v331
        %v340 = vtanh.pop %v336
        %341 = vst [vmem:[%s218] sm:$0xff] %v339
        %342 = vst [vmem:[%s218 + $0x8] sm:$0xff] %v340
        %s343 = sand.u32 %s125, 1
        %s344 = scalar_lea.sflag [#allocation3], %s343
        %s345 = sand.u32 %s125, 1
        %s346 = smul.addr %s345, 16
        %s347 = scalar_lea.vmem [#allocation2], %s346
        // Predicated region
        $region37: #{tpu_custom_call.1} parent=35 // pred_check
          %p348 = pneg %p135
        $region38: #{tpu_custom_call.1} parent=35 // pred_check_branch
          %350 = sbr.rel (%p348) target = $region40
        $region39: #{tpu_custom_call.1} parent=35 // pred_region
          %s352 = ssub.s32 256, 256
          %353 = vsyncadd %s344, %s352
          %s354 = smul.addr %s18, 2
          %s355 = smul.addr %s354, 128
          %s356 = scalar_lea.hbm %s4, %s355
          %s357 = sshll.u32 %s347, 4
          %s358 = int_to_ptr.vmem [resolvable:$true] %s357
          %363 = dma.vmem_to_hbm [thread:$0]  %s358, 256, %s356, %s344, 128, 128, 8
        $region40: #{tpu_custom_call.1} parent=35 // pred_fallthru
          _
      $region36: #{tpu_custom_call.1} parent=5 // pred_fallthru
        _
      %p364 = scmp.le.s32.totalorder 2, %s13
      // Predicated region
      $region41: #{tpu_custom_call.1} parent=5 // pred_check
        %p365 = pneg %p364
      $region42: #{tpu_custom_call.1} parent=5 // pred_check_branch
        %367 = sbr.rel (%p365) target = $region44
      $region43: #{tpu_custom_call.1} parent=5 // pred_region
        %s368 = ssub.s32 %s13, 2
        // Predicated region
        $region45: #{tpu_custom_call.1} parent=43 // pred_check
          %p369 = pneg %p141
        $region46: #{tpu_custom_call.1} parent=43 // pred_check_branch
          %371 = sbr.rel (%p369) target = $region48
        $region47: #{tpu_custom_call.1} parent=43 // pred_region
          %s372 = sand.u32 %s126, 1
          %s373 = scalar_lea.sflag [#allocation3], %s372
          %s374 = sand.u32 %s126, 1
          %s375 = smul.addr %s374, 16
          %s376 = scalar_lea.vmem [#allocation2], %s375
          %377 = dma.done %s373, 256
        $region48: #{tpu_custom_call.1} parent=43 // pred_fallthru
          _
      $region44: #{tpu_custom_call.1} parent=5 // pred_fallthru
        _
    $region6: #{tpu_custom_call.1} parent=1 // loop_footer
      %s17 = sadd.s32 1, %s13
    $region7: #{tpu_custom_call.1} parent=1 // loop_footer_branch
      %12 = sbr.rel target = $region3
    $region8: #{tpu_custom_call.1} parent=1 // loop_exit
      _
    %378 = vsyncpa [#allocation3], 1
    %s379 = scalar_lea.sflag [#allocation3], 1
    %380 = vsyncpa %s379, 1

</llo_original>
